<compile_context>
chip_gen: v5e
topology: v5e:2x2
jax: 0.10.0
libtpu: 0.0.40
codegen_flags: <defaults>
</compile_context>

<pallas_src>
import functools

import jax
import jax.numpy as jnp
from jax.experimental import pallas as pl
from jax.experimental.pallas import tpu as pltpu


def _joints_mse_kernel(w_ref, pred_ref, gt_ref, out_ref, *, use_target_weight):
    # pred/gt tile: (TM, HW); weight tile: (TM, 1); output tile: (1, 8, 128).
    diff = pred_ref[...].astype(jnp.float32) - gt_ref[...].astype(jnp.float32)
    if use_target_weight:
        diff = diff * w_ref[...].astype(jnp.float32)   # (TM,1) broadcasts over HW
    partial = jnp.sum(diff * diff)
    # Broadcast the scalar partial across the whole output tile (plain unmasked
    # store); the wrapper reads one element per tile and sums.
    out_ref[...] = jnp.broadcast_to(partial, out_ref.shape).astype(out_ref.dtype)


def _row_tiling(rows, hw):
    """Pick a row-tile size: (8,128)-friendly, sized so 2 inputs x 2 pipeline
    buffers of (tm, hw) f32 stay under ~16 MiB (safe on v7x's 64 MiB VMEM and
    v5e's small default scoped limit)."""
    budget_bytes = 16 * 1024 * 1024
    max_tm = max(8, budget_bytes // (16 * hw))       # 2 inputs * 2 buffers * 4 B
    if rows <= max_tm:
        return rows, 1                               # full-extent block, no padding
    num_tiles = -(-rows // max_tm)
    tm = ((-(-rows // num_tiles) + 7) // 8) * 8      # even split, sublane aligned
    return tm, -(-rows // tm)


@functools.partial(jax.jit, static_argnames=("use_target_weight",))
def joints_mse_loss(output, target, target_weight, use_target_weight=True):
    """output/target: (B, J, H, W); target_weight: (B, J, 1). Returns scalar loss."""
    B, J, H, W = output.shape
    HW = H * W
    rows = B * J

    # Contiguous flattening only -- no joint-major transpose, no extra HBM traffic.
    pred = output.reshape(rows, HW)
    gt = target.reshape(rows, HW)
    tw = target_weight.reshape(rows, 1).astype(jnp.float32)

    tm, num_tiles = _row_tiling(rows, HW)
    padded_rows = tm * num_tiles
    if padded_rows != rows:
        pad = padded_rows - rows
        pred = jnp.pad(pred, ((0, pad), (0, 0)))     # zero rows contribute 0 to the sum
        gt = jnp.pad(gt, ((0, pad), (0, 0)))
        tw = jnp.pad(tw, ((0, pad), (0, 0)))

    kernel = functools.partial(_joints_mse_kernel,
                               use_target_weight=use_target_weight)

    # Explicit VMEM limit: enough for the double-buffered tiles plus headroom,
    # but never above what v7x (64 MiB physical) can give.
    vmem_need = 2 * (2 * tm * HW * 4) + 2 * (tm * 128 * 4) + 2 * (8 * 128 * 4)
    vmem_limit = int(min(max(vmem_need + (8 << 20), 32 << 20), 56 << 20))

    partials = pl.pallas_call(
        kernel,
        out_shape=jax.ShapeDtypeStruct((num_tiles, 8, 128), jnp.float32),
        grid_spec=pltpu.PrefetchScalarGridSpec(
            num_scalar_prefetch=0,
            grid=(num_tiles,),
            in_specs=[
                pl.BlockSpec((tm, 1), lambda i: (i, 0)),     # target_weight rows
                pl.BlockSpec((tm, HW), lambda i: (i, 0)),    # pred rows
                pl.BlockSpec((tm, HW), lambda i: (i, 0)),    # gt rows
            ],
            out_specs=pl.BlockSpec((1, 8, 128), lambda i: (i, 0, 0)),
        ),
        compiler_params=pltpu.CompilerParams(
            dimension_semantics=("parallel",),
            vmem_limit_bytes=vmem_limit,
        ),
    )(tw, pred, gt)

    scale = 0.5 / float(J * B * HW)
    return jnp.sum(partials[:, 0, 0]) * scale


def _reference(output, target, target_weight, use_target_weight=True):
    """Pure-JAX mirror of the PyTorch module."""
    B, J, H, W = output.shape
    pred = output.reshape(B, J, -1)
    gt = target.reshape(B, J, -1)
    loss = 0.0
    for idx in range(J):
        p = pred[:, idx, :]
        g = gt[:, idx, :]
        if use_target_weight:
            w = target_weight[:, idx]  # (B, 1)
            p = p * w
            g = g * w
        loss = loss + 0.5 * jnp.mean((p - g) ** 2)
    return loss / J


if __name__ == "__main__":
    key = jax.random.PRNGKey(0)
    k1, k2, k3 = jax.random.split(key, 3)

    B, J, H, W = 2, 4, 16, 16
    output = jax.random.normal(k1, (B, J, H, W), dtype=jnp.float32)
    target = jax.random.normal(k2, (B, J, H, W), dtype=jnp.float32)
    target_weight = jax.random.uniform(k3, (B, J, 1), dtype=jnp.float32)

    # weighted path
    loss_w = joints_mse_loss(output, target, target_weight, use_target_weight=True)
    loss_w = jax.block_until_ready(loss_w)
    ref_w = _reference(output, target, target_weight, use_target_weight=True)
    assert jnp.allclose(loss_w, ref_w, rtol=1e-4, atol=1e-6), (loss_w, ref_w)

    # unweighted path
    loss_u = joints_mse_loss(output, target, target_weight, use_target_weight=False)
    loss_u = jax.block_until_ready(loss_u)
    ref_u = _reference(output, target, target_weight, use_target_weight=False)
    assert jnp.allclose(loss_u, ref_u, rtol=1e-4, atol=1e-6), (loss_u, ref_u)

    print("KERNEL_OK")
</pallas_src>

<mosaic_0001>
module attributes {stable_mosaic.version = 11 : i64} {
  func.func @_joints_mse_kernel(%arg0: i32, %arg1: memref<8x1xf32, #tpu.memory_space<vmem>>, %arg2: memref<8x256xf32, #tpu.memory_space<vmem>>, %arg3: memref<8x256xf32, #tpu.memory_space<vmem>>, %arg4: memref<1x8x128xf32, #tpu.memory_space<vmem>>) attributes {dimension_semantics = [#tpu.dimension_semantics<parallel>], iteration_bounds = array<i64: 1>, scalar_prefetch = 0 : i64, scratch_operands = 0 : i64, tpu.core_type = #tpu.core_type<tc>, window_params = [{transform_indices = @transform_0, window_bounds = array<i64: 8, 1>}, {transform_indices = @transform_1, window_bounds = array<i64: 8, 256>}, {transform_indices = @transform_2, window_bounds = array<i64: 8, 256>}, {transform_indices = @transform_3, window_bounds = array<i64: 1, 8, 128>}]} {
    %c0 = arith.constant 0 : index
    %c0_0 = arith.constant 0 : index
    %0 = vector.load %arg2[%c0, %c0_0] : memref<8x256xf32, #tpu.memory_space<vmem>>, vector<8x256xf32>
    %c0_1 = arith.constant 0 : index
    %c0_2 = arith.constant 0 : index
    %1 = vector.load %arg3[%c0_1, %c0_2] : memref<8x256xf32, #tpu.memory_space<vmem>>, vector<8x256xf32>
    %2 = arith.subf %0, %1 : vector<8x256xf32>
    %c0_3 = arith.constant 0 : index
    %c0_4 = arith.constant 0 : index
    %3 = vector.load %arg1[%c0_3, %c0_4] : memref<8x1xf32, #tpu.memory_space<vmem>>, vector<8x1xf32>
    %4 = vector.broadcast %3 : vector<8x1xf32> to vector<8x256xf32>
    %5 = arith.mulf %2, %4 : vector<8x256xf32>
    %6 = arith.mulf %5, %5 : vector<8x256xf32>
    %7 = vector.shape_cast %6 : vector<8x256xf32> to vector<1x8x256xf32>
    %cst = arith.constant dense<0.000000e+00> : vector<1xf32>
    %8 = vector.multi_reduction <add>, %7, %cst [1, 2] : vector<1x8x256xf32> to vector<1xf32>
    %9 = vector.shape_cast %8 : vector<1xf32> to vector<1x1x1xf32>
    %10 = vector.extract %9[0, 0, 0] : f32 from vector<1x1x1xf32>
    %11 = vector.broadcast %10 : f32 to vector<1x8x128xf32>
    %c0_5 = arith.constant 0 : index
    %c0_6 = arith.constant 0 : index
    %c0_7 = arith.constant 0 : index
    %12 = vector.load %arg4[%c0_5, %c0_6, %c0_7] : memref<1x8x128xf32, #tpu.memory_space<vmem>>, vector<1x8x128xf32>
    tpu.vector_store %arg4[%c0_5, %c0_6, %c0_7], %11 {strides = array<i32>} : memref<1x8x128xf32, #tpu.memory_space<vmem>>, vector<1x8x128xf32>,
    return
  }
  func.func @transform_0(%arg0: i32) -> (i32, i32) {
    %c0_i32 = arith.constant 0 : i32
    %c0_i32_0 = arith.constant 0 : i32
    return %arg0, %c0_i32 : i32, i32
  }
  func.func @transform_1(%arg0: i32) -> (i32, i32) {
    %c0_i32 = arith.constant 0 : i32
    %c0_i32_0 = arith.constant 0 : i32
    return %arg0, %c0_i32 : i32, i32
  }
  func.func @transform_2(%arg0: i32) -> (i32, i32) {
    %c0_i32 = arith.constant 0 : i32
    %c0_i32_0 = arith.constant 0 : i32
    return %arg0, %c0_i32 : i32, i32
  }
  func.func @transform_3(%arg0: i32) -> (i32, i32, i32) {
    %c0_i32 = arith.constant 0 : i32
    %c0_i32_0 = arith.constant 0 : i32
    %c0_i32_1 = arith.constant 0 : i32
    return %arg0, %c0_i32, %c0_i32_0 : i32, i32, i32
  }
}

</mosaic_0001>

<llo_original>
// kernel: joints_mse_loss.1
$region0: #{joints_mse_loss.1}
  #allocation0 [shape = 'u32[]', space=smem, size = 0x4, offset = 0x4, fixed_abs, tag = 'smem constant byte address 0x4 - core index']
  #allocation1 [shape = 'u32[72,128]{1,0:T(1,128)}', space=vmem, size = 0x9000, scoped, tag = 'internal scratch']
  %s0 = inlined_call_operand.vmem [shape: f32[8,1], index: 0, kind: input, shape index: {}]
  %s1 = inlined_call_operand.vmem [shape: f32[8,256], index: 1, kind: input, shape index: {}]
  %s2 = inlined_call_operand.vmem [shape: f32[8,256], index: 2, kind: input, shape index: {}]
  %s3 = inlined_call_operand.vmem [shape: f32[1,8,128], index: 3, kind: output, shape index: {}]
  %s4 = sld [smem:[#allocation0]]
  $region22: #{joints_mse_loss.1} parent=0
    _
  %s6 = ssub.s32 1, %s4
  %s7 = scalar_select 0, %s6, %s4
  // Predicated region
  $region2: #{joints_mse_loss.1} parent=0 // pred_check
    _
  $region3: #{joints_mse_loss.1} parent=0 // pred_check_branch
    %9 = sbr.rel (0) target = $region5
  $region4: #{joints_mse_loss.1} parent=0 // pred_region
    _
  $region5: #{joints_mse_loss.1} parent=0 // pred_fallthru
    _
  // Predicated region
  $region6: #{joints_mse_loss.1} parent=0 // pred_check
    _
  $region7: #{joints_mse_loss.1} parent=0 // pred_check_branch
    %11 = sbr.rel (0) target = $region9
  $region8: #{joints_mse_loss.1} parent=0 // pred_region
    _
  $region9: #{joints_mse_loss.1} parent=0 // pred_fallthru
    _
  // Predicated region
  $region10: #{joints_mse_loss.1} parent=0 // pred_check
    _
  $region11: #{joints_mse_loss.1} parent=0 // pred_check_branch
    %13 = sbr.rel (0) target = $region13
  $region12: #{joints_mse_loss.1} parent=0 // pred_region
    _
  $region13: #{joints_mse_loss.1} parent=0 // pred_fallthru
    _
  %v14 = vld [vmem:[%s1] sm:$0xff]
  %v15 = vld [vmem:[%s1 + $0x8] sm:$0xff]
  %v16 = vld [vmem:[%s2] sm:$0xff]
  %v17 = vld [vmem:[%s2 + $0x8] sm:$0xff]
  %v18 = vsub.f32 %v14, %v16
  %v19 = vsub.f32 %v15, %v17
  %v20 = vld [vmem:[%s0] sm:$0xff]
  %22 = vset.pattern.permute.xlu0 0
  %23 = vperm.xlu0 %22, %v20
  %v24 = vpop.permute.xlu0 %23
  %v26 = vmul.f32 %v18, %v24
  %v27 = vmul.f32 %v19, %v24
  %v28 = vmul.f32 %v26, %v26
  %v29 = vmul.f32 %v27, %v27
  %v30 = vadd.f32 %v28, %v29
  %31 = vadd.xlane.f32.xlu0 %v30
  %v32 = vpop.xlane.xlu0 %31
  %v33 = vrot.slane %v32, 4
  %v34 = vadd.f32 %v32, %v33
  %v35 = vrot.slane %v34, 2
  %v36 = vadd.f32 %v34, %v35
  %v37 = vrot.slane %v36, 1
  %v38 = vadd.f32 %v36, %v37
  %s39 = vtos %v38
  %v40 = vstv %s39
  %41 = vst [vmem:[%s3] sm:$0xff] %v40
  // Predicated region
  $region14: #{joints_mse_loss.1} parent=0 // pred_check
    _
  $region15: #{joints_mse_loss.1} parent=0 // pred_check_branch
    %43 = sbr.rel (0) target = $region17
  $region16: #{joints_mse_loss.1} parent=0 // pred_region
    _
  $region17: #{joints_mse_loss.1} parent=0 // pred_fallthru
    _
  // Predicated region
  $region18: #{joints_mse_loss.1} parent=0 // pred_check
    _
  $region19: #{joints_mse_loss.1} parent=0 // pred_check_branch
    %45 = sbr.rel (0) target = $region21
  $region20: #{joints_mse_loss.1} parent=0 // pred_region
    _
  $region21: #{joints_mse_loss.1} parent=0 // pred_fallthru
    _

</llo_original>
